<compile_context>
chip_gen: v5e
topology: v5e:2x2
jax: 0.10.0
libtpu: 0.0.40
codegen_flags: <defaults>
</compile_context>

<pallas_src>
import functools

import jax
import jax.numpy as jnp
from jax import lax
from jax.experimental import pallas as pl
from jax.experimental.pallas import tpu as pltpu


def _vmem_capacity_bytes():
    """Physical VMEM per TensorCore; conservative 64 MiB fallback (v7x-sized)."""
    try:
        return int(pltpu.get_tpu_info().vmem_capacity_bytes)
    except Exception:
        return 64 * 1024 * 1024


def _pool_att_kernel(x_ref,      # VMEM (TB, T, D)
                     n_ref,      # VMEM (TB, 1, 1) int32
                     w1_ref,     # VMEM (1, 1, D)
                     w2_ref,     # VMEM (1, D, O)
                     b2_ref,     # VMEM (1, 1, O)
                     o_ref):     # VMEM (TB, 1, O)
    TB, T, D = x_ref.shape
    O = w2_ref.shape[2]

    x = x_ref[...]                                            # (TB, T, D)

    # Hoisted weight broadcasts (JAX does not CSE broadcast_in_dim).
    w1q = jnp.broadcast_to(w1_ref[...], (TB, 1, D))           # (TB, 1, D)
    w2b = jnp.broadcast_to(w2_ref[...], (TB, D, O))           # (TB, D, O)
    b2 = b2_ref[...]                                          # (1, 1, O)

    # --- attention logits for all TB rows in one batched MXU pass ---
    # (b1 is dropped: a scalar added to every logit cancels exactly in softmax)
    logits = jnp.einsum('bqd,bkd->bqk', w1q, x,
                        preferred_element_type=jnp.float32)   # (TB, 1, T)

    # --- mask invalid time-steps, lane-dense (TB, 1, T) layout ---
    t_idx = lax.broadcasted_iota(jnp.int32, (TB, 1, T), 2)
    logits = jnp.where(t_idx < n_ref[...], logits, -jnp.inf)

    # --- softmax over T, normalization folded into pooled via one EUP reciprocal ---
    m = jnp.max(logits, axis=-1, keepdims=True)               # (TB, 1, 1)
    e = jnp.exp(logits - m)                                   # (TB, 1, T)
    denom = jnp.sum(e, axis=-1, keepdims=True)                # (TB, 1, 1)

    # --- weighted sum over T for all rows at once on the MXU ---
    pooled = jnp.einsum('bqk,bkd->bqd', e.astype(x.dtype), x,
                        preferred_element_type=jnp.float32)   # (TB, 1, D)
    pooled = pooled * pl.reciprocal(denom, approx=True)       # (TB, 1, D)

    # --- output projection for the whole tile, single dense store ---
    out = jnp.einsum('bqd,bdo->bqo', pooled.astype(w2b.dtype), w2b,
                     preferred_element_type=jnp.float32) + b2  # (TB, 1, O)
    o_ref[...] = out.astype(o_ref.dtype)


@functools.partial(jax.jit, static_argnames=("batch_tile",))
def pooling_att_forward(x, n_wins, w1, b1, w2, b2, batch_tile=None):
    """Pallas implementation of Pooling(pool='att') forward.

    x:      (B, T, D) float32 (or bf16)
    n_wins: (B,)       integer number of valid time-steps per batch element
    w1:     (D, 1), b1: (1, 1)   -- linear1 (d_input -> 1); b1 is accepted for API
                                    parity but unused (it cancels in softmax).
    w2:     (D, O), b2: (1, O)   -- linear2 (d_input -> output_size)
    returns (B, O) float32

    Note: n_wins[b] == 0 produces NaN for that row (all logits -inf), matching the
    PyTorch reference behaviour.
    """
    del b1  # cancels exactly in softmax
    B, T, D = x.shape
    O = w2.shape[1]
    itemsize = jnp.dtype(x.dtype).itemsize

    # --- tile sizing: biggest x tile that fits VMEM on this generation ---
    # Budget allows: 2 double-buffered x tiles + one f32 x-tile-sized intermediate
    # the compiler may materialize, plus ~8 MiB headroom for weights/outputs and
    # internal scratch. 128 MiB parts (v5e/v6e) -> ~40 MiB/tile; 64 MiB (v7x) -> ~18.
    vmem_cap = _vmem_capacity_bytes()
    headroom = 8 * 1024 * 1024
    x_tile_budget = int((vmem_cap - headroom) / (2.0 + 4.0 / itemsize))
    row_bytes = T * D * itemsize

    if batch_tile is None:
        tb = max(1, min(B, x_tile_budget // max(1, row_bytes)))
        # Keep the grid >= 2 steps so the "parallel" batch axis can shard across
        # both TensorCores on v7x; one extra grid step is negligible on v5e/v6e.
        if B >= 2:
            tb = min(tb, pl.cdiv(B, 2))
        batch_tile = tb
    TB = int(batch_tile)

    # --- pad the batch so it divides evenly into TB-row tiles ---
    B_pad = pl.cdiv(B, TB) * TB
    if B_pad != B:
        x = jnp.pad(x, ((0, B_pad - B), (0, 0), (0, 0)))
        n_wins = jnp.pad(n_wins, (0, B_pad - B), constant_values=1)

    # Wrapper-side reshapes of the small operands (free at trace time).
    n_wins3 = n_wins.astype(jnp.int32).reshape(B_pad, 1, 1)
    w1q = w1.reshape(1, 1, D)
    w2b = w2.reshape(1, D, O)
    b2b = b2.reshape(1, 1, O)

    # --- vmem limit derived from the actual buffers ---
    x_tile_bytes = TB * T * D * itemsize
    small_bytes = 4 * (D + D * O + O + TB + TB * 8 * 128)   # weights + n + padded out tile
    vmem_limit = 2 * x_tile_bytes + TB * T * D * 4 + 2 * small_bytes + headroom
    vmem_limit = int(min(vmem_cap, max(32 * 1024 * 1024, vmem_limit)))

    grid_spec = pltpu.PrefetchScalarGridSpec(
        num_scalar_prefetch=0,
        grid=(B_pad // TB,),
        in_specs=[
            pl.BlockSpec((TB, T, D), lambda b: (b, 0, 0)),   # x batch tile
            pl.BlockSpec((TB, 1, 1), lambda b: (b, 0, 0)),   # n_wins column
            pl.BlockSpec((1, 1, D), lambda b: (0, 0, 0)),    # w1 (as row)
            pl.BlockSpec((1, D, O), lambda b: (0, 0, 0)),    # w2
            pl.BlockSpec((1, 1, O), lambda b: (0, 0, 0)),    # b2
        ],
        out_specs=pl.BlockSpec((TB, 1, O), lambda b: (b, 0, 0)),
    )

    out = pl.pallas_call(
        _pool_att_kernel,
        out_shape=jax.ShapeDtypeStruct((B_pad, 1, O), jnp.float32),
        grid_spec=grid_spec,
        compiler_params=pltpu.CompilerParams(
            dimension_semantics=("parallel",),     # independent batch tiles
            vmem_limit_bytes=vmem_limit,
        ),
    )(x, n_wins3, w1q, w2b, b2b)
    return out[:B, 0, :]


def _init_linear(key, fan_in, fan_out):
    """Deterministic nn.Linear-style init: U(-1/sqrt(fan_in), 1/sqrt(fan_in))."""
    kw, kb = jax.random.split(key)
    bound = 1.0 / jnp.sqrt(fan_in)
    w = jax.random.uniform(kw, (fan_in, fan_out), jnp.float32, -bound, bound)
    b = jax.random.uniform(kb, (1, fan_out), jnp.float32, -bound, bound)
    return w, b


def reference_pool_att(x, n_wins, w1, b1, w2, b2):
    """Pure-JAX reference matching the PyTorch PoolAtt forward (including b1)."""
    B, T, D = x.shape
    att = jnp.einsum('btd,do->bto', x, w1) + b1[None]        # (B, T, 1)
    att = jnp.transpose(att, (0, 2, 1))                      # (B, 1, T)
    mask = jnp.arange(T)[None, :] < n_wins[:, None]          # (B, T)
    att = jnp.where(mask[:, None, :], att, -jnp.inf)
    att = jax.nn.softmax(att, axis=2)
    pooled = jnp.einsum('bkt,btd->bkd', att, x)[:, 0, :]     # (B, D)
    return pooled @ w2 + b2                                   # (B, O)


if __name__ == "__main__":
    key = jax.random.PRNGKey(0)
    B, T, D, O = 4, 16, 32, 1   # batch, seq, d_input, output_size

    k_x, k_l1, k_l2 = jax.random.split(key, 3)
    x = jax.random.normal(k_x, (B, T, D), dtype=jnp.float32)
    n_wins = jnp.array([16, 9, 3, 1], dtype=jnp.int32)

    # linear1: d_input -> 1 ; linear2: d_input -> output_size
    w1, b1 = _init_linear(k_l1, D, 1)
    w2, b2 = _init_linear(k_l2, D, O)

    ref = reference_pool_att(x, n_wins, w1, b1, w2, b2)

    # Default tiling (TB = 2 here -> 2-step grid, both TCs busy on v7x).
    out = jax.block_until_ready(pooling_att_forward(x, n_wins, w1, b1, w2, b2))
    assert out.shape == (B, O)
    # tolerance loosened slightly because of the approximate EUP reciprocal
    assert jnp.allclose(out, ref, atol=1e-3, rtol=1e-3), (out, ref)

    # Explicit tile -> exercises the batch-padding path (B_pad = 6, TB = 3).
    out2 = jax.block_until_ready(
        pooling_att_forward(x, n_wins, w1, b1, w2, b2, batch_tile=3))
    assert out2.shape == (B, O)
    assert jnp.allclose(out2, ref, atol=1e-3, rtol=1e-3), (out2, ref)

    print("KERNEL_OK")
</pallas_src>

<mosaic_0001>
module attributes {stable_mosaic.version = 11 : i64} {
  func.func @_pool_att_kernel(%arg0: i32, %arg1: memref<2x16x32xf32, #tpu.memory_space<vmem>>, %arg2: memref<2x1x1xi32, #tpu.memory_space<vmem>>, %arg3: memref<1x1x32xf32, #tpu.memory_space<vmem>>, %arg4: memref<1x32x1xf32, #tpu.memory_space<vmem>>, %arg5: memref<1x1x1xf32, #tpu.memory_space<vmem>>, %arg6: memref<2x1x1xf32, #tpu.memory_space<vmem>>) attributes {dimension_semantics = [#tpu.dimension_semantics<parallel>], iteration_bounds = array<i64: 2>, scalar_prefetch = 0 : i64, scratch_operands = 0 : i64, tpu.core_type = #tpu.core_type<tc>, window_params = [{transform_indices = @transform_0, window_bounds = array<i64: 2, 16, 32>}, {transform_indices = @transform_1, window_bounds = array<i64: 2, 1, 1>}, {pipeline_mode = #tpu.pipeline_mode<synchronous>, transform_indices = @transform_2, window_bounds = array<i64: 1, 1, 32>}, {pipeline_mode = #tpu.pipeline_mode<synchronous>, transform_indices = @transform_3, window_bounds = array<i64: 1, 32, 1>}, {pipeline_mode = #tpu.pipeline_mode<synchronous>, transform_indices = @transform_4, window_bounds = array<i64: 1, 1, 1>}, {transform_indices = @transform_5, window_bounds = array<i64: 2, 1, 1>}]} {
    %c0 = arith.constant 0 : index
    %c0_0 = arith.constant 0 : index
    %c0_1 = arith.constant 0 : index
    %0 = vector.load %arg1[%c0, %c0_0, %c0_1] : memref<2x16x32xf32, #tpu.memory_space<vmem>>, vector<2x16x32xf32>
    %c0_2 = arith.constant 0 : index
    %c0_3 = arith.constant 0 : index
    %c0_4 = arith.constant 0 : index
    %1 = vector.load %arg3[%c0_2, %c0_3, %c0_4] : memref<1x1x32xf32, #tpu.memory_space<vmem>>, vector<1x1x32xf32>
    %2 = vector.shape_cast %1 : vector<1x1x32xf32> to vector<1x1x32xf32>
    %3 = vector.broadcast %2 : vector<1x1x32xf32> to vector<2x1x32xf32>
    %c0_5 = arith.constant 0 : index
    %c0_6 = arith.constant 0 : index
    %c0_7 = arith.constant 0 : index
    %4 = vector.load %arg4[%c0_5, %c0_6, %c0_7] : memref<1x32x1xf32, #tpu.memory_space<vmem>>, vector<1x32x1xf32>
    %5 = vector.shape_cast %4 : vector<1x32x1xf32> to vector<1x32x1xf32>
    %6 = vector.broadcast %5 : vector<1x32x1xf32> to vector<2x32x1xf32>
    %c0_8 = arith.constant 0 : index
    %c0_9 = arith.constant 0 : index
    %c0_10 = arith.constant 0 : index
    %7 = vector.load %arg5[%c0_8, %c0_9, %c0_10] : memref<1x1x1xf32, #tpu.memory_space<vmem>>, vector<1x1x1xf32>
    "tpu.trace_start"() <{level = 10 : i32, message = "bqd,bkd->bqk"}> : () -> ()
    %cst = arith.constant dense<0.000000e+00> : vector<2x1x16xf32>
    %8 = tpu.matmul %3, %0, %cst {dimension_numbers = #tpu.dot_dimension_numbers<[2], [2], [1], [1], [0, 0, 0, 1, 1, 1], [0], [0]>} : vector<2x1x32xf32>, vector<2x16x32xf32>, vector<2x1x16xf32> -> vector<2x1x16xf32>
    "tpu.trace_stop"() : () -> ()
    %9 = tpu.iota {dimensions = array<i32: 2>} : vector<2x1x16xi32>
    %c0_11 = arith.constant 0 : index
    %c0_12 = arith.constant 0 : index
    %c0_13 = arith.constant 0 : index
    %10 = vector.load %arg2[%c0_11, %c0_12, %c0_13] : memref<2x1x1xi32, #tpu.memory_space<vmem>>, vector<2x1x1xi32>
    %11 = vector.broadcast %10 : vector<2x1x1xi32> to vector<2x1x16xi32>
    %12 = arith.cmpi slt, %9, %11 : vector<2x1x16xi32>
    %cst_14 = arith.constant 0xFF800000 : f32
    %13 = vector.broadcast %cst_14 : f32 to vector<2x1x16xf32>
    %14 = arith.select %12, %8, %13 : vector<2x1x16xi1>, vector<2x1x16xf32>
    %cst_15 = arith.constant dense<0xFF800000> : vector<2x1xf32>
    %15 = vector.multi_reduction <maximumf>, %14, %cst_15 [2] : vector<2x1x16xf32> to vector<2x1xf32>
    %16 = vector.shape_cast %15 : vector<2x1xf32> to vector<2x1x1xf32>
    %17 = vector.broadcast %16 : vector<2x1x1xf32> to vector<2x1x16xf32>
    %18 = arith.subf %14, %17 : vector<2x1x16xf32>
    %19 = math.exp %18 : vector<2x1x16xf32>
    %cst_16 = arith.constant dense<0.000000e+00> : vector<2x1xf32>
    %20 = vector.multi_reduction <add>, %19, %cst_16 [2] : vector<2x1x16xf32> to vector<2x1xf32>
    %21 = vector.shape_cast %20 : vector<2x1xf32> to vector<2x1x1xf32>
    "tpu.trace_start"() <{level = 10 : i32, message = "bqk,bkd->bqd"}> : () -> ()
    %cst_17 = arith.constant dense<0.000000e+00> : vector<2x1x32xf32>
    %22 = tpu.matmul %19, %0, %cst_17 {dimension_numbers = #tpu.dot_dimension_numbers<[2], [1], [1], [2], [0, 0, 0, 1, 1, 2], [0], [0]>} : vector<2x1x16xf32>, vector<2x16x32xf32>, vector<2x1x32xf32> -> vector<2x1x32xf32>
    "tpu.trace_stop"() : () -> ()
    %23 = tpu.reciprocal %21 {approx = true} : vector<2x1x1xf32> -> vector<2x1x1xf32>
    %24 = vector.broadcast %23 : vector<2x1x1xf32> to vector<2x1x32xf32>
    %25 = arith.mulf %22, %24 : vector<2x1x32xf32>
    "tpu.trace_start"() <{level = 10 : i32, message = "bqd,bdo->bqo"}> : () -> ()
    %cst_18 = arith.constant dense<0.000000e+00> : vector<2x1x1xf32>
    %26 = tpu.matmul %25, %6, %cst_18 {dimension_numbers = #tpu.dot_dimension_numbers<[2], [1], [1], [2], [0, 0, 0, 1, 1, 2], [0], [0]>} : vector<2x1x32xf32>, vector<2x32x1xf32>, vector<2x1x1xf32> -> vector<2x1x1xf32>
    "tpu.trace_stop"() : () -> ()
    %27 = vector.broadcast %7 : vector<1x1x1xf32> to vector<2x1x1xf32>
    %28 = arith.addf %26, %27 : vector<2x1x1xf32>
    %c0_19 = arith.constant 0 : index
    %c0_20 = arith.constant 0 : index
    %c0_21 = arith.constant 0 : index
    %29 = vector.load %arg6[%c0_19, %c0_20, %c0_21] : memref<2x1x1xf32, #tpu.memory_space<vmem>>, vector<2x1x1xf32>
    tpu.vector_store %arg6[%c0_19, %c0_20, %c0_21], %28 {strides = array<i32>} : memref<2x1x1xf32, #tpu.memory_space<vmem>>, vector<2x1x1xf32>,
    return
  }
  func.func @transform_0(%arg0: i32) -> (i32, i32, i32) {
    %c0_i32 = arith.constant 0 : i32
    %c0_i32_0 = arith.constant 0 : i32
    %c0_i32_1 = arith.constant 0 : i32
    return %arg0, %c0_i32, %c0_i32_0 : i32, i32, i32
  }
  func.func @transform_1(%arg0: i32) -> (i32, i32, i32) {
    %c0_i32 = arith.constant 0 : i32
    %c0_i32_0 = arith.constant 0 : i32
    %c0_i32_1 = arith.constant 0 : i32
    return %arg0, %c0_i32, %c0_i32_0 : i32, i32, i32
  }
  func.func @transform_2(%arg0: i32) -> (i32, i32, i32) {
    %c0_i32 = arith.constant 0 : i32
    %c0_i32_0 = arith.constant 0 : i32
    %c0_i32_1 = arith.constant 0 : i32
    %c0_i32_2 = arith.constant 0 : i32
    return %c0_i32, %c0_i32_0, %c0_i32_1 : i32, i32, i32
  }
  func.func @transform_3(%arg0: i32) -> (i32, i32, i32) {
    %c0_i32 = arith.constant 0 : i32
    %c0_i32_0 = arith.constant 0 : i32
    %c0_i32_1 = arith.constant 0 : i32
    %c0_i32_2 = arith.constant 0 : i32
    return %c0_i32, %c0_i32_0, %c0_i32_1 : i32, i32, i32
  }
  func.func @transform_4(%arg0: i32) -> (i32, i32, i32) {
    %c0_i32 = arith.constant 0 : i32
    %c0_i32_0 = arith.constant 0 : i32
    %c0_i32_1 = arith.constant 0 : i32
    %c0_i32_2 = arith.constant 0 : i32
    return %c0_i32, %c0_i32_0, %c0_i32_1 : i32, i32, i32
  }
  func.func @transform_5(%arg0: i32) -> (i32, i32, i32) {
    %c0_i32 = arith.constant 0 : i32
    %c0_i32_0 = arith.constant 0 : i32
    %c0_i32_1 = arith.constant 0 : i32
    return %arg0, %c0_i32, %c0_i32_0 : i32, i32, i32
  }
}

</mosaic_0001>

<llo_original>
// kernel: pooling_att_forward.1
$region0: #{pooling_att_forward.1}
  #allocation0 [shape = 'u32[]', space=smem, size = 0x4, offset = 0x4, fixed_abs, tag = 'smem constant byte address 0x4 - core index']
  #allocation1 [shape = 'u32[72,128]{1,0:T(1,128)}', space=vmem, size = 0x9000, scoped, tag = 'internal scratch']
  #allocation2 [shape = 'f32[1,1,1]{2,1,0:T(1,128)S(1)}', space=vmem, size = 0x200, scoped, tag = 'scoped memory for pooling_att_forward.1']
  %s0 = inlined_call_operand.hbm [shape: f32[4,16,32], index: 0, kind: input, shape index: {}]
  %s1 = inlined_call_operand.vmem [shape: s32[4,1,1], index: 1, kind: input, shape index: {}]
  %s2 = inlined_call_operand.vmem [shape: f32[1,1,32], index: 2, kind: input, shape index: {}]
  %s3 = inlined_call_operand.vmem [shape: f32[1,32,1], index: 3, kind: input, shape index: {}]
  %s4 = inlined_call_operand.<no memory space> [shape: f32[1,1,1], index: 4, kind: input, shape index: {}]
  %s5 = inlined_call_operand.vmem [shape: f32[4,1,1], index: 5, kind: output, shape index: {}]
  %s6 = sld [smem:[#allocation0]]
  $region57: #{pooling_att_forward.1} parent=0
    _
  %s8 = ssub.s32 1, %s6
  %s9 = scalar_select 0, %s8, %s6
  %v10 = vstv %s4
  %11 = vst [vmem:[#allocation2] sm:$0x1] %v10
  $region1: #{pooling_att_forward.1} parent=0
    #allocation3 [shape = 'u8[32768]{0}', space=vmem, size = 0x8000, scoped, tag = 'input window, operand 0']
    #allocation4 [shape = 's32[2]{0}', space=sflag, size = 0x8, scoped, tag = 'scoped memory for pooling_att_forward.1']
    %12 = vsyncpa [#allocation4], 0
    %s13 = scalar_lea.sflag [#allocation4], 1
    %14 = vsyncpa %s13, 0
    loop: start=0, step=1, limit=4
    $region2: #{pooling_att_forward.1} parent=1 // loop_pre_header
      _
    $region3: #{pooling_att_forward.1} parent=1 // loop_header
      %s16 = sphi 0, %s20
      %p17 = scmp.ge.s32.totalorder %s16, 4
      %s26 = sphi 0, %s28
      %s29 = sphi 0, %s26
      %s30 = sphi 0, %s29
      %s46 = sphi 0, %s30
      %s52 = sphi 0, %s54
      %s55 = sphi 0, %s52
      %s56 = sphi 0, %s55
      %s72 = sphi 0, %s56
      %s76 = sphi 0, %s76
      %s78 = sphi 0, %s76
      %s79 = sphi 0, %s78
      %s93 = sphi 0, %s79
      %s97 = sphi 0, %s97
      %s99 = sphi 0, %s97
      %s100 = sphi 0, %s99
      %s114 = sphi 0, %s100
      %s118 = sphi 0, %s118
      %s120 = sphi 0, %s118
      %s121 = sphi 0, %s120
      %s135 = sphi 0, %s121
      %s141 = sphi 0, %s143
      %s144 = sphi 0, %s141
      %s145 = sphi 0, %s144
      %s161 = sphi 0, %s145
    $region4: #{pooling_att_forward.1} parent=1 // loop_header_branch
      %19 = sbr.rel (%p17) target = $region8
    $region5: #{pooling_att_forward.1} parent=1 // loop_body
      %s21 = ssub.s32 %s16, 1
      %s22 = ssub.s32 %s16, 2
      %s23 = sadd.s32 %s16, 1
      %s24 = ssub.s32 %s16, %s23
      %p25 = scmp.eq.s32.totalorder %s24, 0
      %s27 = sadd.s32 %s26, 1
      %s28 = scalar_select %p25, %s26, %s27
      %p31 = pneg %p25
      %p32 = scmp.eq.s32.totalorder %s16, 1
      %p33 = por %p31, %p32
      %p34 = scmp.ne.s32.totalorder %s26, %s29
      %p35 = scmp.eq.s32.totalorder %s16, 0
      %p36 = por %p34, %p35
      %p37 = scmp.ne.s32.totalorder %s26, %s29
      %p38 = scmp.eq.s32.totalorder %s21, 1
      %p39 = por %p37, %p38
      %p40 = scmp.ne.s32.totalorder %s29, %s30
      %p41 = scmp.eq.s32.totalorder %s21, 0
      %p42 = por %p40, %p41
      %p43 = scmp.ne.s32.totalorder %s29, %s30
      %p44 = scmp.eq.s32.totalorder %s22, 1
      %p45 = por %p43, %p44
      %p47 = scmp.ne.s32.totalorder %s30, %s46
      %p48 = scmp.eq.s32.totalorder %s22, 0
      %p49 = por %p47, %p48
      %s50 = ssub.s32 %s16, %s23
      %p51 = scmp.eq.s32.totalorder %s50, 0
      %s53 = sadd.s32 %s52, 1
      %s54 = scalar_select %p51, %s52, %s53
      %p57 = pneg %p51
      %p58 = scmp.eq.s32.totalorder %s16, 1
      %p59 = por %p57, %p58
      %p60 = scmp.ne.s32.totalorder %s52, %s55
      %p61 = scmp.eq.s32.totalorder %s16, 0
      %p62 = por %p60, %p61
      %p63 = scmp.ne.s32.totalorder %s52, %s55
      %p64 = scmp.eq.s32.totalorder %s21, 1
      %p65 = por %p63, %p64
      %p66 = scmp.ne.s32.totalorder %s55, %s56
      %p67 = scmp.eq.s32.totalorder %s21, 0
      %p68 = por %p66, %p67
      %p69 = scmp.ne.s32.totalorder %s55, %s56
      %p70 = scmp.eq.s32.totalorder %s22, 1
      %p71 = por %p69, %p70
      %p73 = scmp.ne.s32.totalorder %s56, %s72
      %p74 = scmp.eq.s32.totalorder %s22, 0
      %p75 = por %p73, %p74
      %s77 = sadd.s32 %s76, 1
      %p80 = scmp.eq.s32.totalorder %s16, 1
      %p81 = scmp.ne.s32.totalorder %s76, %s78
      %p82 = scmp.eq.s32.totalorder %s16, 0
      %p83 = por %p81, %p82
      %p84 = scmp.ne.s32.totalorder %s76, %s78
      %p85 = scmp.eq.s32.totalorder %s21, 1
      %p86 = por %p84, %p85
      %p87 = scmp.ne.s32.totalorder %s78, %s79
      %p88 = scmp.eq.s32.totalorder %s21, 0
      %p89 = por %p87, %p88
      %p90 = scmp.ne.s32.totalorder %s78, %s79
      %p91 = scmp.eq.s32.totalorder %s22, 1
      %p92 = por %p90, %p91
      %p94 = scmp.ne.s32.totalorder %s79, %s93
      %p95 = scmp.eq.s32.totalorder %s22, 0
      %p96 = por %p94, %p95
      %s98 = sadd.s32 %s97, 1
      %p101 = scmp.eq.s32.totalorder %s16, 1
      %p102 = scmp.ne.s32.totalorder %s97, %s99
      %p103 = scmp.eq.s32.totalorder %s16, 0
      %p104 = por %p102, %p103
      %p105 = scmp.ne.s32.totalorder %s97, %s99
      %p106 = scmp.eq.s32.totalorder %s21, 1
      %p107 = por %p105, %p106
      %p108 = scmp.ne.s32.totalorder %s99, %s100
      %p109 = scmp.eq.s32.totalorder %s21, 0
      %p110 = por %p108, %p109
      %p111 = scmp.ne.s32.totalorder %s99, %s100
      %p112 = scmp.eq.s32.totalorder %s22, 1
      %p113 = por %p111, %p112
      %p115 = scmp.ne.s32.totalorder %s100, %s114
      %p116 = scmp.eq.s32.totalorder %s22, 0
      %p117 = por %p115, %p116
      %s119 = sadd.s32 %s118, 1
      %p122 = scmp.eq.s32.totalorder %s16, 1
      %p123 = scmp.ne.s32.totalorder %s118, %s120
      %p124 = scmp.eq.s32.totalorder %s16, 0
      %p125 = por %p123, %p124
      %p126 = scmp.ne.s32.totalorder %s118, %s120
      %p127 = scmp.eq.s32.totalorder %s21, 1
      %p128 = por %p126, %p127
      %p129 = scmp.ne.s32.totalorder %s120, %s121
      %p130 = scmp.eq.s32.totalorder %s21, 0
      %p131 = por %p129, %p130
      %p132 = scmp.ne.s32.totalorder %s120, %s121
      %p133 = scmp.eq.s32.totalorder %s22, 1
      %p134 = por %p132, %p133
      %p136 = scmp.ne.s32.totalorder %s121, %s135
      %p137 = scmp.eq.s32.totalorder %s22, 0
      %p138 = por %p136, %p137
      %s139 = ssub.s32 %s16, %s23
      %p140 = scmp.eq.s32.totalorder %s139, 0
      %s142 = sadd.s32 %s141, 1
      %s143 = scalar_select %p140, %s141, %s142
      %p146 = pneg %p140
      %p147 = scmp.eq.s32.totalorder %s16, 1
      %p148 = por %p146, %p147
      %p149 = scmp.ne.s32.totalorder %s141, %s144
      %p150 = scmp.eq.s32.totalorder %s16, 0
      %p151 = por %p149, %p150
      %p152 = scmp.ne.s32.totalorder %s141, %s144
      %p153 = scmp.eq.s32.totalorder %s21, 1
      %p154 = por %p152, %p153
      %p155 = scmp.ne.s32.totalorder %s144, %s145
      %p156 = scmp.eq.s32.totalorder %s21, 0
      %p157 = por %p155, %p156
      %p158 = scmp.ne.s32.totalorder %s144, %s145
      %p159 = scmp.eq.s32.totalorder %s22, 1
      %p160 = por %p158, %p159
      %p162 = scmp.ne.s32.totalorder %s145, %s161
      %p163 = scmp.eq.s32.totalorder %s22, 0
      %p164 = por %p162, %p163
      %p165 = scmp.le.s32.totalorder 1, %s16
      %p166 = scmp.lt.s32.totalorder %s16, 3
      %p167 = pnand %p165, %p166
      %p168 = pneg %p167
      // Predicated region
      $region9: #{pooling_att_forward.1} parent=5 // pred_check
        _
      $region10: #{pooling_att_forward.1} parent=5 // pred_check_branch
        %170 = sbr.rel (%p167) target = $region12
      $region11: #{pooling_att_forward.1} parent=5 // pred_region
        %s171 = ssub.s32 %s16, 1
        // Predicated region
        $region13: #{pooling_att_forward.1} parent=11 // pred_check
          %p172 = pneg %p89
        $region14: #{pooling_att_forward.1} parent=11 // pred_check_branch
          %174 = sbr.rel (%p172) target = $region16
        $region15: #{pooling_att_forward.1} parent=11 // pred_region
          _
        $region16: #{pooling_att_forward.1} parent=11 // pred_fallthru
          _
        // Predicated region
        $region17: #{pooling_att_forward.1} parent=11 // pred_check
          %p175 = pneg %p110
        $region18: #{pooling_att_forward.1} parent=11 // pred_check_branch
          %177 = sbr.rel (%p175) target = $region20
        $region19: #{pooling_att_forward.1} parent=11 // pred_region
          _
        $region20: #{pooling_att_forward.1} parent=11 // pred_fallthru
          _
        // Predicated region
        $region21: #{pooling_att_forward.1} parent=11 // pred_check
          %p178 = pneg %p131
        $region22: #{pooling_att_forward.1} parent=11 // pred_check_branch
          %180 = sbr.rel (%p178) target = $region24
        $region23: #{pooling_att_forward.1} parent=11 // pred_region
          _
        $region24: #{pooling_att_forward.1} parent=11 // pred_fallthru
          _
      $region12: #{pooling_att_forward.1} parent=5 // pred_fallthru
        _
      %p181 = scmp.lt.s32.totalorder %s16, 2
      // Predicated region
      $region25: #{pooling_att_forward.1} parent=5 // pred_check
        %p182 = pneg %p181
      $region26: #{pooling_att_forward.1} parent=5 // pred_check_branch
        %184 = sbr.rel (%p182) target = $region28
      $region27: #{pooling_att_forward.1} parent=5 // pred_region
        // Predicated region
        $region29: #{pooling_att_forward.1} parent=27 // pred_check
          %p185 = pneg %p36
        $region30: #{pooling_att_forward.1} parent=27 // pred_check_branch
          %187 = sbr.rel (%p185) target = $region32
        $region31: #{pooling_att_forward.1} parent=27 // pred_region
          %s188 = sand.u32 %s26, 1
          %s189 = scalar_lea.sflag [#allocation4], %s188
          %s190 = sand.u32 %s26, 1
          %s191 = smul.addr %s190, 32
          %s192 = scalar_lea.vmem [#allocation3], %s191
          %s193 = smul.u32 2, %s16
          %195 = vsyncadd %s189, 0
          %s196 = smul.addr %s193, 2
          %s197 = smul.addr %s196, 8
          %s198 = scalar_lea.hbm %s0, %s197
          %s199 = sshll.u32 %s198, 4
          %s200 = int_to_ptr.hbm [resolvable:$true] %s199
          %s201 = sshll.u32 %s192, 4
          %s202 = int_to_ptr.vmem [resolvable:$true] %s201
          %207 = dma.hbm_to_vmem [thread:$0]  %s200, 512, %s202, %s189, 128, 128, 8
        $region32: #{pooling_att_forward.1} parent=27 // pred_fallthru
          _
        // Predicated region
        $region33: #{pooling_att_forward.1} parent=27 // pred_check
          %p208 = pneg %p62
        $region34: #{pooling_att_forward.1} parent=27 // pred_check_branch
          %210 = sbr.rel (%p208) target = $region36
        $region35: #{pooling_att_forward.1} parent=27 // pred_region
          %s211 = smul.u32 2, %s16
          %p212 = scmp.lt.s32.totalorder %s211, 3
          %s213 = scalar_select %p212, %s211, 3
          %s214 = scalar_lea.vmem %s1, %s213
          %s215 = smul.u32 2, %s16
        $region36: #{pooling_att_forward.1} parent=27 // pred_fallthru
          _
      $region28: #{pooling_att_forward.1} parent=5 // pred_fallthru
        _
      %p216 = scmp.le.s32.totalorder 1, %s16
      %p217 = scmp.lt.s32.totalorder %s16, 3
      %p218 = pnand %p216, %p217
      %p219 = pneg %p218
      // Predicated region
      $region37: #{pooling_att_forward.1} parent=5 // pred_check
        _
      $region38: #{pooling_att_forward.1} parent=5 // pred_check_branch
        %221 = sbr.rel (%p218) target = $region40
      $region39: #{pooling_att_forward.1} parent=5 // pred_region
        %s222 = ssub.s32 %s16, 1
        %s223 = sand.u32 %s29, 1
        %s224 = scalar_lea.sflag [#allocation4], %s223
        %s225 = sand.u32 %s29, 1
        %s226 = smul.addr %s225, 32
        %s227 = scalar_lea.vmem [#allocation3], %s226
        // Predicated region
        $region41: #{pooling_att_forward.1} parent=39 // pred_check
          %p228 = pneg %p42
        $region42: #{pooling_att_forward.1} parent=39 // pred_check_branch
          %230 = sbr.rel (%p228) target = $region44
        $region43: #{pooling_att_forward.1} parent=39 // pred_region
          %232 = dma.done %s224, 512
        $region44: #{pooling_att_forward.1} parent=39 // pred_fallthru
          _
        %s233 = sand.u32 %s29, 1
        %s234 = scalar_lea.sflag [#allocation4], %s233
        %s235 = sand.u32 %s29, 1
        %s236 = smul.addr %s235, 32
        %s237 = scalar_lea.vmem [#allocation3], %s236
        %p238 = pneg %p42
        %p239 = pneg %p39
        %s240 = smul.u32 2, %s21
        %p241 = scmp.lt.s32.totalorder %s240, 3
        %s242 = scalar_select %p241, %s240, 3
        %s243 = scalar_lea.vmem %s1, %s242
        %p244 = pneg %p68
        %p245 = pneg %p65
        %p246 = pneg %p89
        %p247 = pneg %p86
        %p248 = pneg %p110
        %p249 = pneg %p107
        %p250 = pneg %p131
        %p251 = pneg %p128
        %p252 = pneg %p157
        %p253 = pneg %p154
        %s254 = smul.u32 2, %s21
        %p255 = scmp.lt.s32.totalorder %s254, 3
        %s256 = scalar_select %p255, %s254, 3
        %s257 = scalar_lea.vmem %s5, %s256
        %s258 = smul.u32 2, %s21
        %s259 = smul.u32 2, %s21
        %p260 = scmp.lt.s32.totalorder %s259, 3
        %s261 = scalar_select %p260, %s259, 3
        %s262 = scalar_lea.vmem %s1, %s261
        %s263 = smul.u32 2, %s21
        %s264 = smul.u32 2, %s21
        %p265 = scmp.lt.s32.totalorder %s264, 3
        %s266 = scalar_select %p265, %s264, 3
        %s267 = scalar_lea.vmem %s5, %s266
        %s268 = smul.u32 2, %s21
        %v269 = vld [vmem:[%s227] sm:$0xff]
        %v270 = vld [vmem:[%s227 + $0x8] sm:$0xff]
        %v271 = vld [vmem:[%s227 + $0x10] sm:$0xff]
        %v272 = vld [vmem:[%s227 + $0x18] sm:$0xff]
        %v273 = vld [vmem:[%s2] sm:$0x1]
        %v274 = vld [vmem:[%s3] sm:$0xff]
        %v275 = vld [vmem:[%s3 + $0x8] sm:$0xff]
        %v276 = vld [vmem:[%s3 + $0x10] sm:$0xff]
        %v277 = vld [vmem:[%s3 + $0x18] sm:$0xff]
        %v278 = vld [vmem:[#allocation2] sm:$0x1]
        %vm279 = vcmask 261120
        %v281 = vsel %vm279, %v273, 0
        %v284 = vsel %vm279, %v269, 0
        %v287 = vsel %vm279, %v270, 0
        %289 = vmatpush.xpose.msra.mxu0 0.0
        %290 = vmatpush.xpose.msra.mxu0 0.0
        %291 = vmatpush.xpose.msra.mxu0 0.0
        %292 = vmatpush.xpose.msra.mxu0 0.0
        %293 = vmatpush.xpose.msra.mxu0 0.0
        %294 = vmatpush.xpose.msra.mxu0 0.0
        %295 = vmatpush.xpose.msra.mxu0 0.0
        %296 = vmatpush.xpose.msra.mxu0 0.0
        %297 = vmatpush.xpose.msra.mxu0 0.0
        %298 = vmatpush.xpose.msra.mxu0 0.0
        %299 = vmatpush.xpose.msra.mxu0 0.0
        %300 = vmatpush.xpose.msra.mxu0 0.0
        %301 = vmatpush.xpose.msra.mxu0 0.0
        %302 = vmatpush.xpose.msra.mxu0 0.0
        %303 = vmatpush.xpose.msra.mxu0 %v287
        %304 = vmatpush.xpose.msra.mxu0 %v284
        %305 = vmatmul.f32.gmra.mxu0 %v281
        %v306 = vpop.f32.mrf.mxu0
        %v307 = vadd.f32 0.0, %v306
        %308 = vdwg.mxu0
        %v310 = vsel %vm279, %v271, 0
        %v313 = vsel %vm279, %v272, 0
        %315 = vmatpush.xpose.msra.mxu0 0.0
        %316 = vmatpush.xpose.msra.mxu0 0.0
        %317 = vmatpush.xpose.msra.mxu0 0.0
        %318 = vmatpush.xpose.msra.mxu0 0.0
        %319 = vmatpush.xpose.msra.mxu0 0.0
        %320 = vmatpush.xpose.msra.mxu0 0.0
        %321 = vmatpush.xpose.msra.mxu0 0.0
        %322 = vmatpush.xpose.msra.mxu0 0.0
        %323 = vmatpush.xpose.msra.mxu0 0.0
        %324 = vmatpush.xpose.msra.mxu0 0.0
        %325 = vmatpush.xpose.msra.mxu0 0.0
        %326 = vmatpush.xpose.msra.mxu0 0.0
        %327 = vmatpush.xpose.msra.mxu0 0.0
        %328 = vmatpush.xpose.msra.mxu0 0.0
        %329 = vmatpush.xpose.msra.mxu0 %v313
        %330 = vmatpush.xpose.msra.mxu0 %v310
        %331 = vmatmul.f32.gmra.mxu0 %v281
        %v332 = vpop.f32.mrf.mxu0
        %v333 = vadd.f32 0.0, %v332
        %334 = vdwg.mxu0
        %v335 = vlaneseq
        %v336 = vand.u32 %v335, 127
        %v337 = vld [vmem:[%s262] sm:$0x1]
        %v338 = vld [vmem:[%s262 + $0x1] sm:$0x1]
        %339 = vset.pattern.permute.xlu0 0
        %340 = vperm.xlu0 %339, %v337
        %v341 = vpop.permute.xlu0 %340
        %v342 = vperm.slane %v341, 0
        %343 = vset.pattern.permute.xlu0 0
        %344 = vperm.xlu0 %343, %v338
        %v345 = vpop.permute.xlu0 %344
        %v346 = vperm.slane %v345, 0
        %vm347 = vcmp.lt.s32.totalorder %v336, %v342
        %vm348 = vcmp.lt.s32.totalorder %v336, %v346
        %v349 = vsel %vm347, %v307, -inf
        %v350 = vsel %vm348, %v333, -inf
        %vm351 = vcmask 122880
        %v352 = vsel %vm351, %v349, -inf
        %353 = vmax.xlane.f32.xlu0 %v352
        %v354 = vpop.xlane.xlu0 %353
        %v355 = vsel %vm351, %v350, -inf
        %356 = vmax.xlane.f32.xlu0 %v355
        %v357 = vpop.xlane.xlu0 %356
        %v358 = vsub.f32 %v349, %v354
        %v359 = vsub.f32 %v350, %v357
        %v360 = vmul.f32 %v358, 1.442695
        %v361 = vpow.pop %v360
        %v362 = vmul.f32 %v359, 1.442695
        %v363 = vpow.pop %v362
        %v364 = vsel %vm351, %v361, 0.0
        %365 = vadd.xlane.f32.xlu0 %v364
        %v366 = vpop.xlane.xlu0 %365
        %v367 = vsel %vm351, %v363, 0.0
        %368 = vadd.xlane.f32.xlu0 %v367
        %v369 = vpop.xlane.xlu0 %368
        %vm370 = vcmask 130048
        %v372 = vsel %vm370, %v361, 0
        %374 = vmatpush.msra.mxu0 0.0
        %375 = vmatpush.msra.mxu0 0.0
        %376 = vmatpush.msra.mxu0 0.0
        %377 = vmatpush.msra.mxu0 0.0
        %378 = vmatpush.msra.mxu0 0.0
        %379 = vmatpush.msra.mxu0 0.0
        %380 = vmatpush.msra.mxu0 0.0
        %381 = vmatpush.msra.mxu0 0.0
        %382 = vmatpush.msra.mxu0 0.0
        %383 = vmatpush.msra.mxu0 0.0
        %384 = vmatpush.msra.mxu0 0.0
        %385 = vmatpush.msra.mxu0 0.0
        %386 = vmatpush.msra.mxu0 0.0
        %387 = vmatpush.msra.mxu0 0.0
        %388 = vmatpush.msra.mxu0 %v270
        %389 = vmatpush.msra.mxu0 %v269
        %390 = vmatmul.f32.gmra.mxu0 %v372
        %v391 = vpop.f32.mrf.mxu0
        %v392 = vadd.f32 0.0, %v391
        %393 = vdwg.mxu0
        %v395 = vsel %vm370, %v363, 0
        %397 = vmatpush.msra.mxu0 0.0
        %398 = vmatpush.msra.mxu0 0.0
        %399 = vmatpush.msra.mxu0 0.0
        %400 = vmatpush.msra.mxu0 0.0
        %401 = vmatpush.msra.mxu0 0.0
        %402 = vmatpush.msra.mxu0 0.0
        %403 = vmatpush.msra.mxu0 0.0
        %404 = vmatpush.msra.mxu0 0.0
        %405 = vmatpush.msra.mxu0 0.0
        %406 = vmatpush.msra.mxu0 0.0
        %407 = vmatpush.msra.mxu0 0.0
        %408 = vmatpush.msra.mxu0 0.0
        %409 = vmatpush.msra.mxu0 0.0
        %410 = vmatpush.msra.mxu0 0.0
        %411 = vmatpush.msra.mxu0 %v272
        %412 = vmatpush.msra.mxu0 %v271
        %413 = vmatmul.f32.gmra.mxu0 %v395
        %v414 = vpop.f32.mrf.mxu0
        %v415 = vadd.f32 0.0, %v414
        %416 = vdwg.mxu0
        %v417 = vrcp.pop %v366
        %v418 = vrcp.pop %v369
        %v419 = vmul.f32 %v392, %v417
        %v420 = vmul.f32 %v415, %v418
        %v422 = vsel %vm279, %v419, 0
        %424 = vmatpush.msra.mxu0 0.0
        %425 = vmatpush.msra.mxu0 0.0
        %426 = vmatpush.msra.mxu0 0.0
        %427 = vmatpush.msra.mxu0 0.0
        %428 = vmatpush.msra.mxu0 0.0
        %429 = vmatpush.msra.mxu0 0.0
        %430 = vmatpush.msra.mxu0 0.0
        %431 = vmatpush.msra.mxu0 0.0
        %432 = vmatpush.msra.mxu0 0.0
        %433 = vmatpush.msra.mxu0 0.0
        %434 = vmatpush.msra.mxu0 0.0
        %435 = vmatpush.msra.mxu0 0.0
        %436 = vmatpush.msra.mxu0 %v277
        %437 = vmatpush.msra.mxu0 %v276
        %438 = vmatpush.msra.mxu0 %v275
        %439 = vmatpush.msra.mxu0 %v274
        %440 = vmatmul.f32.gmra.mxu0 %v422
        %v441 = vpop.f32.mrf.mxu0
        %v442 = vadd.f32 %v278, %v441
        %443 = vdwg.mxu0
        %v445 = vsel %vm279, %v420, 0
        %447 = vmatpush.msra.mxu0 0.0
        %448 = vmatpush.msra.mxu0 0.0
        %449 = vmatpush.msra.mxu0 0.0
        %450 = vmatpush.msra.mxu0 0.0
        %451 = vmatpush.msra.mxu0 0.0
        %452 = vmatpush.msra.mxu0 0.0
        %453 = vmatpush.msra.mxu0 0.0
        %454 = vmatpush.msra.mxu0 0.0
        %455 = vmatpush.msra.mxu0 0.0
        %456 = vmatpush.msra.mxu0 0.0
        %457 = vmatpush.msra.mxu0 0.0
        %458 = vmatpush.msra.mxu0 0.0
        %459 = vmatpush.msra.mxu0 %v277
        %460 = vmatpush.msra.mxu0 %v276
        %461 = vmatpush.msra.mxu0 %v275
        %462 = vmatpush.msra.mxu0 %v274
        %463 = vmatmul.f32.gmra.mxu0 %v445
        %v464 = vpop.f32.mrf.mxu0
        %v465 = vadd.f32 %v278, %v464
        %466 = vdwg.mxu0
        %vm467 = vcmask 0
        %468 = vst.msk [vmem:[%s267] sm:$0x1] %vm467, %v442
        %469 = vst.msk [vmem:[%s267 + $0x1] sm:$0x1] %vm467, %v465
        %s470 = smul.u32 2, %s21
        %p471 = scmp.lt.s32.totalorder %s470, 3
        %s472 = scalar_select %p471, %s470, 3
        %s473 = scalar_lea.vmem %s5, %s472
        // Predicated region
        $region45: #{pooling_att_forward.1} parent=39 // pred_check
          %p474 = pneg %p154
        $region46: #{pooling_att_forward.1} parent=39 // pred_check_branch
          %476 = sbr.rel (%p474) target = $region48
        $region47: #{pooling_att_forward.1} parent=39 // pred_region
          %s477 = smul.u32 2, %s21
        $region48: #{pooling_att_forward.1} parent=39 // pred_fallthru
          _
      $region40: #{pooling_att_forward.1} parent=5 // pred_fallthru
        _
      %p478 = scmp.le.s32.totalorder 2, %s16
      // Predicated region
      $region49: #{pooling_att_forward.1} parent=5 // pred_check
        %p479 = pneg %p478
      $region50: #{pooling_att_forward.1} parent=5 // pred_check_branch
        %481 = sbr.rel (%p479) target = $region52
      $region51: #{pooling_att_forward.1} parent=5 // pred_region
        %s482 = ssub.s32 %s16, 2
        // Predicated region
        $region53: #{pooling_att_forward.1} parent=51 // pred_check
          %p483 = pneg %p160
        $region54: #{pooling_att_forward.1} parent=51 // pred_check_branch
          %485 = sbr.rel (%p483) target = $region56
        $region55: #{pooling_att_forward.1} parent=51 // pred_region
          %s486 = smul.u32 2, %s22
          %p487 = scmp.lt.s32.totalorder %s486, 3
          %s488 = scalar_select %p487, %s486, 3
          %s489 = scalar_lea.vmem %s5, %s488
        $region56: #{pooling_att_forward.1} parent=51 // pred_fallthru
          _
      $region52: #{pooling_att_forward.1} parent=5 // pred_fallthru
        _
    $region6: #{pooling_att_forward.1} parent=1 // loop_footer
      %s20 = sadd.s32 1, %s16
    $region7: #{pooling_att_forward.1} parent=1 // loop_footer_branch
      %15 = sbr.rel target = $region3
    $region8: #{pooling_att_forward.1} parent=1 // loop_exit
      _
    %490 = vsyncpa [#allocation4], 1
    %s491 = scalar_lea.sflag [#allocation4], 1
    %492 = vsyncpa %s491, 1

</llo_original>
